<compile_context>
chip_gen: v6e
topology: v6e:2x2x1
jax: 0.10.0
libtpu: 0.0.40
codegen_flags: <defaults>
</compile_context>

<pallas_src>
import functools
import math

import jax
import jax.numpy as jnp
from jax.experimental import pallas as pl
from jax.experimental.pallas import tpu as pltpu

_MAX_LANE_TILE = 4096  # cap thw so the unrolled lane-chunk loop stays <= 32 adds


def _gate_kernel(x_ref, wc_ref, bc_ref, w1_ref, b1_ref, w2_ref, b2_ref,
                 pred_ref, unc_ref, acc_ref, *, n_lane_chunks):
    """Grid: (N tiles, HW tiles).  x_ref: (tn, C, thw).

    n_lane_chunks > 0  -> acc_ref is (tn, C, 128) lane-resident partial sums.
    n_lane_chunks == 0 -> unaligned-HW fallback, acc_ref is (tn, C).
    """
    hw_idx = pl.program_id(1)

    @pl.when(hw_idx == 0)
    def _init():
        acc_ref[...] = jnp.zeros_like(acc_ref)

    if n_lane_chunks > 0:
        # Pure-VPU accumulation: each 128-wide lane chunk of x has the same
        # (sublane=C, lane=128) layout as acc, so no per-step XLU reduce.
        partial = jnp.maximum(x_ref[:, :, 0:128], 0).astype(jnp.float32)
        for c in range(1, n_lane_chunks):
            partial = partial + jnp.maximum(
                x_ref[:, :, c * 128:(c + 1) * 128], 0).astype(jnp.float32)
        acc_ref[...] += partial
    else:
        # Unaligned HW: single HW grid step; reduce along lanes once.
        x = jnp.maximum(x_ref[...], 0).astype(jnp.float32)
        acc_ref[...] += jnp.sum(x, axis=-1)

    @pl.when(hw_idx == pl.num_programs(1) - 1)
    def _finalize():
        if n_lane_chunks > 0:
            pooled = jnp.sum(acc_ref[...], axis=-1)      # single 128->1 XLU reduce
        else:
            pooled = acc_ref[...]                         # already (tn, C)
        # 1/HW is folded into wc_ref / w1_ref by the wrapper (biases unchanged).
        pred = jnp.dot(pooled, wc_ref[...],
                       preferred_element_type=jnp.float32) + bc_ref[...]
        h = jnp.dot(pooled, w1_ref[...],
                    preferred_element_type=jnp.float32) + b1_ref[...]
        h = jnp.maximum(h, 0.0)
        z = jnp.dot(h, w2_ref[...],
                    preferred_element_type=jnp.float32) + b2_ref[...]
        unc = 1.0 / (1.0 + jnp.exp(-z))
        pred_ref[...] = pred.astype(pred_ref.dtype)
        unc_ref[...] = unc.astype(unc_ref.dtype)


def _vmem_capacity_bytes():
    """Per-generation VMEM capacity (v5e/v6e 128 MiB, v7x 64 MiB per TC)."""
    try:
        cap = int(pltpu.get_tpu_info().vmem_capacity_bytes)
        if cap > 0:
            return cap
    except Exception:
        pass
    return 64 * 1024 * 1024   # conservative default (v7x-sized)


def _divisors(n):
    return [d for d in range(1, n + 1) if n % d == 0]


def _plan_tiles(N, C, HW, K, Hid, x_elem_bytes):
    """Choose (tn, thw), accumulator layout and the scoped-VMEM limit so the
    double-buffered x block + double-buffered weights + accumulator fit the
    current generation's VMEM with headroom."""
    vmem_cap = _vmem_capacity_bytes()
    total_budget = max(min(int(0.70 * vmem_cap), vmem_cap - (8 << 20)), 8 << 20)

    # Static VMEM consumers: weights/biases are double-buffered by the default
    # pipeline even with constant index maps, so budget them at 2x.
    w_bytes = 2 * 4 * (C * K + K + C * Hid + Hid + Hid + 1)
    slack = 1 << 20            # internal/compiler scratch headroom

    aligned = (HW % 128 == 0)
    if aligned:
        thw_opts = sorted(
            (d for d in _divisors(HW) if d % 128 == 0 and d <= _MAX_LANE_TILE),
            reverse=True) or [HW]
    else:
        # TODO(synk): add a C-tiling grid axis for very large unaligned C*HW
        # instead of a single full-HW block per N-tile.
        thw_opts = [HW]
    thw_min = thw_opts[-1]

    # tn must divide N and be 8-aligned (or == N) so the (tn, K)/(tn, 1)
    # output blocks satisfy the (8, 128) tiling rule.
    tn_opts = sorted((d for d in _divisors(N) if d == N or d % 8 == 0),
                     reverse=True)

    def usage(tn, thw):
        x_b = 2 * tn * C * thw * x_elem_bytes                  # double-buffered x
        acc_b = tn * C * (128 if aligned else 1) * 4           # f32 accumulator
        out_b = 2 * (tn * K + tn) * 4                          # double-buffered outs
        return x_b + acc_b + out_b + w_bytes + slack

    def pick_tn(cands):
        for tn in cands:
            if usage(tn, thw_min) <= total_budget:
                return tn
        return None

    # Prefer >= 2 blocks on the parallel N axis (keeps both v7x TCs busy).
    small = [d for d in tn_opts if d <= N // 2]
    tn = pick_tn(small) or pick_tn(tn_opts) or tn_opts[-1]

    thw = thw_min
    for cand in thw_opts:
        if usage(tn, cand) <= total_budget:
            thw = cand
            break

    vmem_limit = int(0.85 * vmem_cap)
    return tn, thw, aligned, vmem_limit


@jax.jit
def learned_uncertainty_gate(x_nchw, params):
    """x_nchw: (N, C, H, W) f32 or bf16 -> (predictions (N, K), uncertainty (N, 1))."""
    N, C, H, W = x_nchw.shape
    HW = H * W
    x = x_nchw.reshape(N, C, HW)

    inv_hw = 1.0 / float(HW)
    # Pre-transpose PyTorch-layout weights once to (in, out) and fold the 1/HW
    # pooling scale into the first-layer weights (biases unchanged), so the
    # kernel consumes spatial *sums* with no extra scale or in-kernel .T.
    wc_t = params["wc"].T * inv_hw          # (C, K)
    w1_t = params["w1"].T * inv_hw          # (C, Hid)
    w2_t = params["w2"].T                   # (Hid, 1)
    bc, b1, b2 = params["bc"], params["b1"], params["b2"]
    K = wc_t.shape[1]
    Hid = w1_t.shape[1]

    x_elem_bytes = jnp.dtype(x.dtype).itemsize
    tn, thw, aligned, vmem_limit = _plan_tiles(N, C, HW, K, Hid, x_elem_bytes)
    grid = (N // tn, HW // thw)
    n_lane_chunks = (thw // 128) if aligned else 0
    acc_shape = (tn, C, 128) if aligned else (tn, C)

    def const(shape):
        # Constant block index -> fetched once, VMEM-resident across grid steps.
        return pl.BlockSpec(shape, lambda n, h: (0,) * len(shape))

    kernel = functools.partial(_gate_kernel, n_lane_chunks=n_lane_chunks)

    cost = pl.CostEstimate(
        flops=int(2 * N * C * HW + 2 * N * C * (K + Hid) + 2 * N * Hid),
        transcendentals=int(N),
        bytes_accessed=int(N * C * HW * x_elem_bytes
                           + 4 * (C * K + K + C * Hid + Hid + Hid + 1)
                           + 4 * N * (K + 1)),
    )

    pred, unc = pl.pallas_call(
        kernel,
        out_shape=(
            jax.ShapeDtypeStruct((N, K), jnp.float32),
            jax.ShapeDtypeStruct((N, 1), jnp.float32),
        ),
        grid_spec=pltpu.PrefetchScalarGridSpec(
            num_scalar_prefetch=0,
            grid=grid,
            in_specs=[
                # x: tiled over (N, HW); double-buffered by the Pallas pipeline.
                pl.BlockSpec((tn, C, thw), lambda n, h: (n, 0, h)),
                const((C, K)),
                const((1, K)),
                const((C, Hid)),
                const((1, Hid)),
                const((Hid, 1)),
                const((1, 1)),
            ],
            out_specs=(
                # Constant along the HW (reduction) axis -> written back once.
                pl.BlockSpec((tn, K), lambda n, h: (n, 0)),
                pl.BlockSpec((tn, 1), lambda n, h: (n, 0)),
            ),
            scratch_shapes=[pltpu.VMEM(acc_shape, jnp.float32)],
        ),
        compiler_params=pltpu.CompilerParams(
            dimension_semantics=("parallel", "arbitrary"),
            vmem_limit_bytes=vmem_limit),
        cost_estimate=cost,
    )(x, wc_t, bc, w1_t, b1, w2_t, b2)
    return pred, unc


def _xavier_uniform(key, shape):
    fan_out, fan_in = shape
    bound = math.sqrt(6.0 / (fan_in + fan_out))
    return jax.random.uniform(key, shape, jnp.float32, -bound, bound)


def _linear_bias(key, fan_in, fan_out):
    bound = 1.0 / math.sqrt(fan_in)
    return jax.random.uniform(key, (1, fan_out), jnp.float32, -bound, bound)


def init_params(key, num_features, num_classes):
    hid = num_features // 2
    ks = jax.random.split(key, 6)
    return {
        # target_classifier: Linear(num_features, num_classes)
        "wc": _xavier_uniform(ks[0], (num_classes, num_features)),
        "bc": _linear_bias(ks[1], num_features, num_classes),
        # uncertainty_estimator[0]: Linear(num_features, num_features // 2)
        "w1": _xavier_uniform(ks[2], (hid, num_features)),
        "b1": _linear_bias(ks[3], num_features, hid),
        # uncertainty_estimator[2]: Linear(num_features // 2, 1)
        "w2": _xavier_uniform(ks[4], (1, hid)),
        "b2": _linear_bias(ks[5], hid, 1),
    }


def _reference(x_nchw, params):
    # Pure-JAX reference of the PyTorch forward (sanity check).
    x = jnp.maximum(x_nchw.astype(jnp.float32), 0.0)
    pooled = jnp.mean(x, axis=(2, 3))
    pred = pooled @ params["wc"].T + params["bc"]
    h = jnp.maximum(pooled @ params["w1"].T + params["b1"], 0.0)
    unc = jax.nn.sigmoid(h @ params["w2"].T + params["b2"])
    return pred, unc


def _check(key, N, C, H, W, num_classes, x_dtype=jnp.float32,
           atol=1e-5, rtol=1e-5):
    k_x, k_p = jax.random.split(key)
    x = jax.random.normal(k_x, (N, C, H, W), jnp.float32).astype(x_dtype)
    params = init_params(k_p, num_features=C, num_classes=num_classes)

    pred, unc = learned_uncertainty_gate(x, params)
    pred = jax.block_until_ready(pred)
    unc = jax.block_until_ready(unc)

    ref_pred, ref_unc = _reference(x, params)
    assert pred.shape == (N, num_classes) and unc.shape == (N, 1)
    assert jnp.allclose(pred, ref_pred, atol=atol, rtol=rtol), (
        f"pred mismatch max err {jnp.max(jnp.abs(pred - ref_pred))}")
    assert jnp.allclose(unc, ref_unc, atol=atol, rtol=rtol), (
        f"unc mismatch max err {jnp.max(jnp.abs(unc - ref_unc))}")


if __name__ == "__main__":
    key = jax.random.PRNGKey(0)
    keys = jax.random.split(key, 4)

    # Toy config matching the module: grid (1, 1), lane-chunked accumulation.
    _check(keys[0], N=2, C=4, H=16, W=16, num_classes=10)
    # >=2 parallel N-tiles and multi-step HW accumulation (tn=8, thw=4096,
    # grid=(2, 4)) -> exercises init/accumulate/finalize across grid steps.
    _check(keys[1], N=16, C=8, H=128, W=128, num_classes=10)
    # Unaligned spatial size (HW=100) -> full-HW fallback path, (tn, C) acc.
    _check(keys[2], N=2, C=4, H=10, W=10, num_classes=10)
    # bf16 input path: halves HBM read traffic; accumulation stays f32.
    _check(keys[3], N=16, C=8, H=64, W=64, num_classes=10,
           x_dtype=jnp.bfloat16, atol=1e-4, rtol=1e-4)

    print("KERNEL_OK")
</pallas_src>

<mosaic_0001>
module attributes {stable_mosaic.version = 11 : i64} {
  func.func @_gate_kernel(%arg0: i32, %arg1: i32, %arg2: memref<2x4x256xf32, #tpu.memory_space<vmem>>, %arg3: memref<4x10xf32, #tpu.memory_space<vmem>>, %arg4: memref<1x10xf32, #tpu.memory_space<vmem>>, %arg5: memref<4x2xf32, #tpu.memory_space<vmem>>, %arg6: memref<1x2xf32, #tpu.memory_space<vmem>>, %arg7: memref<2x1xf32, #tpu.memory_space<vmem>>, %arg8: memref<1x1xf32, #tpu.memory_space<vmem>>, %arg9: memref<2x10xf32, #tpu.memory_space<vmem>>, %arg10: memref<2x1xf32, #tpu.memory_space<vmem>>, %arg11: memref<2x4x128xf32, #tpu.memory_space<vmem>>) attributes {dimension_semantics = [#tpu.dimension_semantics<parallel>, #tpu.dimension_semantics<arbitrary>], iteration_bounds = array<i64: 1, 1>, scalar_prefetch = 0 : i64, scratch_operands = 1 : i64, tpu.core_type = #tpu.core_type<tc>, window_params = [{transform_indices = @transform_0, window_bounds = array<i64: 2, 4, 256>}, {pipeline_mode = #tpu.pipeline_mode<synchronous>, transform_indices = @transform_1, window_bounds = array<i64: 4, 10>}, {pipeline_mode = #tpu.pipeline_mode<synchronous>, transform_indices = @transform_2, window_bounds = array<i64: 1, 10>}, {pipeline_mode = #tpu.pipeline_mode<synchronous>, transform_indices = @transform_3, window_bounds = array<i64: 4, 2>}, {pipeline_mode = #tpu.pipeline_mode<synchronous>, transform_indices = @transform_4, window_bounds = array<i64: 1, 2>}, {pipeline_mode = #tpu.pipeline_mode<synchronous>, transform_indices = @transform_5, window_bounds = array<i64: 2, 1>}, {pipeline_mode = #tpu.pipeline_mode<synchronous>, transform_indices = @transform_6, window_bounds = array<i64: 1, 1>}, {transform_indices = @transform_7, window_bounds = array<i64: 2, 10>}, {transform_indices = @transform_8, window_bounds = array<i64: 2, 1>}]} {
    %c0_i32 = arith.constant 0 : i32
    %0 = arith.cmpi eq, %arg1, %c0_i32 : i32
    %1 = arith.extui %0 : i1 to i32
    %c0_i32_0 = arith.constant 0 : i32
    %2 = arith.cmpi ne, %1, %c0_i32_0 : i32
    scf.if %2 {
      %cst_14 = arith.constant 0.000000e+00 : f32
      %16 = vector.broadcast %cst_14 : f32 to vector<2x4x128xf32>
      %c0_15 = arith.constant 0 : index
      %c0_16 = arith.constant 0 : index
      %c0_17 = arith.constant 0 : index
      %17 = vector.load %arg11[%c0_15, %c0_16, %c0_17] : memref<2x4x128xf32, #tpu.memory_space<vmem>>, vector<2x4x128xf32>
      tpu.vector_store %arg11[%c0_15, %c0_16, %c0_17], %16 {strides = array<i32>} : memref<2x4x128xf32, #tpu.memory_space<vmem>>, vector<2x4x128xf32>,
    } else {
    }
    %c0 = arith.constant 0 : index
    %c0_1 = arith.constant 0 : index
    %c0_2 = arith.constant 0 : index
    %3 = vector.load %arg2[%c0, %c0_1, %c0_2] : memref<2x4x256xf32, #tpu.memory_space<vmem>>, vector<2x4x128xf32>
    %cst = arith.constant 0.000000e+00 : f32
    %4 = vector.broadcast %cst : f32 to vector<2x4x128xf32>
    %5 = arith.maximumf %3, %4 : vector<2x4x128xf32>
    %c0_3 = arith.constant 0 : index
    %c0_4 = arith.constant 0 : index
    %c128 = arith.constant 128 : index
    %6 = vector.load %arg2[%c0_3, %c0_4, %c128] : memref<2x4x256xf32, #tpu.memory_space<vmem>>, vector<2x4x128xf32>
    %cst_5 = arith.constant 0.000000e+00 : f32
    %7 = vector.broadcast %cst_5 : f32 to vector<2x4x128xf32>
    %8 = arith.maximumf %6, %7 : vector<2x4x128xf32>
    %9 = arith.addf %5, %8 : vector<2x4x128xf32>
    %c0_6 = arith.constant 0 : index
    %c0_7 = arith.constant 0 : index
    %c0_8 = arith.constant 0 : index
    %10 = vector.load %arg11[%c0_6, %c0_7, %c0_8] : memref<2x4x128xf32, #tpu.memory_space<vmem>>, vector<2x4x128xf32>
    %11 = arith.addf %10, %9 : vector<2x4x128xf32>
    %c0_9 = arith.constant 0 : index
    %c0_10 = arith.constant 0 : index
    %c0_11 = arith.constant 0 : index
    %12 = vector.load %arg11[%c0_9, %c0_10, %c0_11] : memref<2x4x128xf32, #tpu.memory_space<vmem>>, vector<2x4x128xf32>
    tpu.vector_store %arg11[%c0_9, %c0_10, %c0_11], %11 {strides = array<i32>} : memref<2x4x128xf32, #tpu.memory_space<vmem>>, vector<2x4x128xf32>,
    %c0_i32_12 = arith.constant 0 : i32
    %13 = arith.cmpi eq, %arg1, %c0_i32_12 : i32
    %14 = arith.extui %13 : i1 to i32
    %c0_i32_13 = arith.constant 0 : i32
    %15 = arith.cmpi ne, %14, %c0_i32_13 : i32
    scf.if %15 {
      %c0_14 = arith.constant 0 : index
      %c0_15 = arith.constant 0 : index
      %c0_16 = arith.constant 0 : index
      %16 = vector.load %arg11[%c0_14, %c0_15, %c0_16] : memref<2x4x128xf32, #tpu.memory_space<vmem>>, vector<2x4x128xf32>
      %cst_17 = arith.constant dense<0.000000e+00> : vector<2x4xf32>
      %17 = vector.multi_reduction <add>, %16, %cst_17 [2] : vector<2x4x128xf32> to vector<2x4xf32>
      %c0_18 = arith.constant 0 : index
      %c0_19 = arith.constant 0 : index
      %18 = vector.load %arg3[%c0_18, %c0_19] : memref<4x10xf32, #tpu.memory_space<vmem>>, vector<4x10xf32>
      %cst_20 = arith.constant dense<0.000000e+00> : vector<2x10xf32>
      %19 = tpu.matmul %17, %18, %cst_20 {dimension_numbers = #tpu.dot_dimension_numbers<[1], [0], [0], [1], [0, 0, 1, 1], [], []>} : vector<2x4xf32>, vector<4x10xf32>, vector<2x10xf32> -> vector<2x10xf32>
      %c0_21 = arith.constant 0 : index
      %c0_22 = arith.constant 0 : index
      %20 = vector.load %arg4[%c0_21, %c0_22] : memref<1x10xf32, #tpu.memory_space<vmem>>, vector<1x10xf32>
      %21 = vector.broadcast %20 : vector<1x10xf32> to vector<2x10xf32>
      %22 = arith.addf %19, %21 : vector<2x10xf32>
      %c0_23 = arith.constant 0 : index
      %c0_24 = arith.constant 0 : index
      %23 = vector.load %arg5[%c0_23, %c0_24] : memref<4x2xf32, #tpu.memory_space<vmem>>, vector<4x2xf32>
      %cst_25 = arith.constant dense<0.000000e+00> : vector<2x2xf32>
      %24 = tpu.matmul %17, %23, %cst_25 {dimension_numbers = #tpu.dot_dimension_numbers<[1], [0], [0], [1], [0, 0, 1, 1], [], []>} : vector<2x4xf32>, vector<4x2xf32>, vector<2x2xf32> -> vector<2x2xf32>
      %c0_26 = arith.constant 0 : index
      %c0_27 = arith.constant 0 : index
      %25 = vector.load %arg6[%c0_26, %c0_27] : memref<1x2xf32, #tpu.memory_space<vmem>>, vector<1x2xf32>
      %26 = vector.broadcast %25 : vector<1x2xf32> to vector<2x2xf32>
      %27 = arith.addf %24, %26 : vector<2x2xf32>
      %cst_28 = arith.constant 0.000000e+00 : f32
      %28 = vector.broadcast %cst_28 : f32 to vector<2x2xf32>
      %29 = arith.maximumf %27, %28 : vector<2x2xf32>
      %c0_29 = arith.constant 0 : index
      %c0_30 = arith.constant 0 : index
      %30 = vector.load %arg7[%c0_29, %c0_30] : memref<2x1xf32, #tpu.memory_space<vmem>>, vector<2x1xf32>
      %cst_31 = arith.constant dense<0.000000e+00> : vector<2x1xf32>
      %31 = tpu.matmul %29, %30, %cst_31 {dimension_numbers = #tpu.dot_dimension_numbers<[1], [0], [0], [1], [0, 0, 1, 1], [], []>} : vector<2x2xf32>, vector<2x1xf32>, vector<2x1xf32> -> vector<2x1xf32>
      %c0_32 = arith.constant 0 : index
      %c0_33 = arith.constant 0 : index
      %32 = vector.load %arg8[%c0_32, %c0_33] : memref<1x1xf32, #tpu.memory_space<vmem>>, vector<1x1xf32>
      %33 = vector.broadcast %32 : vector<1x1xf32> to vector<2x1xf32>
      %34 = arith.addf %31, %33 : vector<2x1xf32>
      %cst_34 = arith.constant 0.000000e+00 : f32
      %35 = vector.broadcast %cst_34 : f32 to vector<2x1xf32>
      %36 = arith.subf %35, %34 : vector<2x1xf32>
      %37 = math.exp %36 : vector<2x1xf32>
      %cst_35 = arith.constant 1.000000e+00 : f32
      %38 = vector.broadcast %cst_35 : f32 to vector<2x1xf32>
      %39 = arith.addf %38, %37 : vector<2x1xf32>
      %cst_36 = arith.constant 1.000000e+00 : f32
      %40 = vector.broadcast %cst_36 : f32 to vector<2x1xf32>
      %41 = arith.divf %40, %39 : vector<2x1xf32>
      %c0_37 = arith.constant 0 : index
      %c0_38 = arith.constant 0 : index
      %42 = vector.load %arg9[%c0_37, %c0_38] : memref<2x10xf32, #tpu.memory_space<vmem>>, vector<2x10xf32>
      tpu.vector_store %arg9[%c0_37, %c0_38], %22 {strides = array<i32>} : memref<2x10xf32, #tpu.memory_space<vmem>>, vector<2x10xf32>,
      %c0_39 = arith.constant 0 : index
      %c0_40 = arith.constant 0 : index
      %43 = vector.load %arg10[%c0_39, %c0_40] : memref<2x1xf32, #tpu.memory_space<vmem>>, vector<2x1xf32>
      tpu.vector_store %arg10[%c0_39, %c0_40], %41 {strides = array<i32>} : memref<2x1xf32, #tpu.memory_space<vmem>>, vector<2x1xf32>,
    } else {
    }
    return
  }
  func.func @transform_0(%arg0: i32, %arg1: i32) -> (i32, i32, i32) {
    %c0_i32 = arith.constant 0 : i32
    %c0_i32_0 = arith.constant 0 : i32
    return %arg0, %c0_i32, %arg1 : i32, i32, i32
  }
  func.func @transform_1(%arg0: i32, %arg1: i32) -> (i32, i32) {
    %c0_i32 = arith.constant 0 : i32
    %c0_i32_0 = arith.constant 0 : i32
    %c0_i32_1 = arith.constant 0 : i32
    return %c0_i32, %c0_i32_0 : i32, i32
  }
  func.func @transform_2(%arg0: i32, %arg1: i32) -> (i32, i32) {
    %c0_i32 = arith.constant 0 : i32
    %c0_i32_0 = arith.constant 0 : i32
    %c0_i32_1 = arith.constant 0 : i32
    return %c0_i32, %c0_i32_0 : i32, i32
  }
  func.func @transform_3(%arg0: i32, %arg1: i32) -> (i32, i32) {
    %c0_i32 = arith.constant 0 : i32
    %c0_i32_0 = arith.constant 0 : i32
    %c0_i32_1 = arith.constant 0 : i32
    return %c0_i32, %c0_i32_0 : i32, i32
  }
  func.func @transform_4(%arg0: i32, %arg1: i32) -> (i32, i32) {
    %c0_i32 = arith.constant 0 : i32
    %c0_i32_0 = arith.constant 0 : i32
    %c0_i32_1 = arith.constant 0 : i32
    return %c0_i32, %c0_i32_0 : i32, i32
  }
  func.func @transform_5(%arg0: i32, %arg1: i32) -> (i32, i32) {
    %c0_i32 = arith.constant 0 : i32
    %c0_i32_0 = arith.constant 0 : i32
    %c0_i32_1 = arith.constant 0 : i32
    return %c0_i32, %c0_i32_0 : i32, i32
  }
  func.func @transform_6(%arg0: i32, %arg1: i32) -> (i32, i32) {
    %c0_i32 = arith.constant 0 : i32
    %c0_i32_0 = arith.constant 0 : i32
    %c0_i32_1 = arith.constant 0 : i32
    return %c0_i32, %c0_i32_0 : i32, i32
  }
  func.func @transform_7(%arg0: i32, %arg1: i32) -> (i32, i32) {
    %c0_i32 = arith.constant 0 : i32
    %c0_i32_0 = arith.constant 0 : i32
    return %arg0, %c0_i32 : i32, i32
  }
  func.func @transform_8(%arg0: i32, %arg1: i32) -> (i32, i32) {
    %c0_i32 = arith.constant 0 : i32
    %c0_i32_0 = arith.constant 0 : i32
    return %arg0, %c0_i32 : i32, i32
  }
}

</mosaic_0001>

<llo_original>
// kernel: learned_uncertainty_gate.1
$region0: #{learned_uncertainty_gate.1}
  #allocation0 [shape = 'u32[]', space=smem, size = 0x4, offset = 0x4, fixed_abs, tag = 'smem constant byte address 0x4 - core index']
  #allocation1 [shape = 'u32[144,128]{1,0:T(1,128)}', space=vmem, size = 0x12000, scoped, tag = 'internal scratch']
  #allocation2 [shape = 'f32[2,4,128]{2,1,0:T(4,128)}', space=vmem, size = 0x1000, scoped, tag = 'scratch operand']
  #allocation3 [shape = 'f32[1,1]{1,0:T(1,128)S(1)}', space=vmem, size = 0x200, scoped, tag = 'scoped memory for learned_uncertainty_gate.1']
  %s0 = inlined_call_operand.vmem [shape: f32[2,4,256], index: 0, kind: input, shape index: {}]
  %s1 = inlined_call_operand.vmem [shape: f32[4,10], index: 1, kind: input, shape index: {}]
  %s2 = inlined_call_operand.vmem [shape: f32[1,10], index: 2, kind: input, shape index: {}]
  %s3 = inlined_call_operand.vmem [shape: f32[4,2], index: 3, kind: input, shape index: {}]
  %s4 = inlined_call_operand.vmem [shape: f32[1,2], index: 4, kind: input, shape index: {}]
  %s5 = inlined_call_operand.vmem [shape: f32[2,1], index: 5, kind: input, shape index: {}]
  %s6 = inlined_call_operand.<no memory space> [shape: f32[1,1], index: 6, kind: input, shape index: {}]
  %s7 = inlined_call_operand.hbm [shape: f32[2,10], index: 7, kind: output, shape index: {0}]
  %s8 = inlined_call_operand.vmem [shape: f32[2,1], index: 8, kind: output, shape index: {1}]
  %9 = xla_tuple %s7, %s8
  %s10 = sld [smem:[#allocation0]]
  $region54: #{learned_uncertainty_gate.1} parent=0
    _
  %s12 = ssub.s32 1, %s10
  %s13 = scalar_select 0, %s12, %s10
  %v14 = vstv %s6
  %15 = vst [vmem:[#allocation3] sm:$0x1] %v14
  $region1: #{learned_uncertainty_gate.1} parent=0
    #allocation4 [shape = 'u8[1024]{0}', space=vmem, size = 0x400, scoped, tag = 'output window, operand 0, single buffered']
    #allocation5 [shape = 's32[1]{0}', space=sflag, size = 0x4, scoped, tag = 'scoped memory for learned_uncertainty_gate.1']
    %16 = vsyncpa [#allocation5], 0
    // Predicated region
    $region2: #{learned_uncertainty_gate.1} parent=1 // pred_check
      _
    $region3: #{learned_uncertainty_gate.1} parent=1 // pred_check_branch
      %18 = sbr.rel (0) target = $region5
    $region4: #{learned_uncertainty_gate.1} parent=1 // pred_region
      _
    $region5: #{learned_uncertainty_gate.1} parent=1 // pred_fallthru
      _
    // Predicated region
    $region6: #{learned_uncertainty_gate.1} parent=1 // pred_check
      _
    $region7: #{learned_uncertainty_gate.1} parent=1 // pred_check_branch
      %20 = sbr.rel (0) target = $region9
    $region8: #{learned_uncertainty_gate.1} parent=1 // pred_region
      _
    $region9: #{learned_uncertainty_gate.1} parent=1 // pred_fallthru
      _
    // Predicated region
    $region10: #{learned_uncertainty_gate.1} parent=1 // pred_check
      _
    $region11: #{learned_uncertainty_gate.1} parent=1 // pred_check_branch
      %22 = sbr.rel (0) target = $region13
    $region12: #{learned_uncertainty_gate.1} parent=1 // pred_region
      _
    $region13: #{learned_uncertainty_gate.1} parent=1 // pred_fallthru
      _
    // Predicated region
    $region14: #{learned_uncertainty_gate.1} parent=1 // pred_check
      _
    $region15: #{learned_uncertainty_gate.1} parent=1 // pred_check_branch
      %24 = sbr.rel (0) target = $region17
    $region16: #{learned_uncertainty_gate.1} parent=1 // pred_region
      _
    $region17: #{learned_uncertainty_gate.1} parent=1 // pred_fallthru
      _
    // Predicated region
    $region18: #{learned_uncertainty_gate.1} parent=1 // pred_check
      _
    $region19: #{learned_uncertainty_gate.1} parent=1 // pred_check_branch
      %26 = sbr.rel (0) target = $region21
    $region20: #{learned_uncertainty_gate.1} parent=1 // pred_region
      _
    $region21: #{learned_uncertainty_gate.1} parent=1 // pred_fallthru
      _
    // Predicated region
    $region22: #{learned_uncertainty_gate.1} parent=1 // pred_check
      _
    $region23: #{learned_uncertainty_gate.1} parent=1 // pred_check_branch
      %28 = sbr.rel (0) target = $region25
    $region24: #{learned_uncertainty_gate.1} parent=1 // pred_region
      _
    $region25: #{learned_uncertainty_gate.1} parent=1 // pred_fallthru
      _
    // Predicated region
    $region26: #{learned_uncertainty_gate.1} parent=1 // pred_check
      _
    $region27: #{learned_uncertainty_gate.1} parent=1 // pred_check_branch
      %30 = sbr.rel (0) target = $region29
    $region28: #{learned_uncertainty_gate.1} parent=1 // pred_region
      _
    $region29: #{learned_uncertainty_gate.1} parent=1 // pred_fallthru
      _
    %p31 = scmp.eq.s32.totalorder 0, 0
    // Predicated region
    $region30: #{learned_uncertainty_gate.1} parent=1 // pred_check
      %p32 = pneg %p31
    $region31: #{learned_uncertainty_gate.1} parent=1 // pred_check_branch
      %34 = sbr.rel (%p32) target = $region33
    $region32: #{learned_uncertainty_gate.1} parent=1 // pred_region
      %35 = vst [vmem:[#allocation2] sm:$0xf] 0.0
      %36 = vst [vmem:[#allocation2 + $0x4] sm:$0xf] 0.0
    $region33: #{learned_uncertainty_gate.1} parent=1 // pred_fallthru
      _
    %v37 = vld [vmem:[%s0] sm:$0xf]
    %v38 = vld [vmem:[%s0 + $0x8] sm:$0xf]
    %v39 = vmax.f32 %v37, 0.0
    %v40 = vmax.f32 %v38, 0.0
    %v41 = vld [vmem:[%s0 + $0x4] sm:$0xf]
    %v42 = vld [vmem:[%s0 + $0xc] sm:$0xf]
    %v43 = vmax.f32 %v41, 0.0
    %v44 = vmax.f32 %v42, 0.0
    %v45 = vadd.f32 %v39, %v43
    %v46 = vadd.f32 %v40, %v44
    %v47 = vld [vmem:[#allocation2] sm:$0xf]
    %v48 = vld [vmem:[#allocation2 + $0x4] sm:$0xf]
    %v49 = vadd.f32 %v47, %v45
    %v50 = vadd.f32 %v48, %v46
    %51 = vst [vmem:[#allocation2] sm:$0xf] %v49
    %52 = vst [vmem:[#allocation2 + $0x4] sm:$0xf] %v50
    // Predicated region
    $region34: #{learned_uncertainty_gate.1} parent=1 // pred_check
      %p53 = pneg %p31
    $region35: #{learned_uncertainty_gate.1} parent=1 // pred_check_branch
      %55 = sbr.rel (%p53) target = $region37
    $region36: #{learned_uncertainty_gate.1} parent=1 // pred_region
      %v56 = vld [vmem:[#allocation2] sm:$0xf]
      %v57 = vld [vmem:[#allocation2 + $0x4] sm:$0xf]
      %vm58 = vcmask 1043456
      %v59 = vsel %vm58, %v56, 0.0
      %60 = vadd.xlane.f32.xlu0 %v59
      %v61 = vpop.xlane.xlu0 %60
      %v62 = vsel %vm58, %v57, 0.0
      %63 = vadd.xlane.f32.xlu0 %v62
      %v64 = vpop.xlane.xlu0 %63
      %v65 = vld [vmem:[%s1] sm:$0xf]
      %v66 = vld [vmem:[%s2] sm:$0x1]
      %v68 = vlaneseq
      %v69 = vshrl.u32 %v68, 7
      %v70 = vsub.s32 0, %v69
      %v71 = vrot.slane %v66, %v70
      %v75 = vlaneseq
      %v76 = vand.u32 %v75, 127
      %v77 = vlaneseq
      %v78 = vshrl.u32 %v77, 7
      %v79 = vsub.s32 %v76, %v78
      %v80 = vrot.slane %v61, %v79
      %v81 = vlaneseq
      %v82 = vshrl.u32 %v81, 7
      %v83 = vsub.s32 %v76, %v82
      %v84 = vrot.slane %v64, %v83
      %vm85 = vcmask 1041409
      %v86 = vsel %vm85, %v84, %v80
      %vm87 = vcmask 31744
      %v88 = vsel %vm87, %v86, 0
      %v91 = vsel %vm58, %v65, 0
      %93 = vmatprep.subr.mxu0 0.0
      %94 = vmatpush1.msra.mxu0 0.0
      %95 = vmatprep.subr.mxu0 0.0
      %96 = vmatpush1.msra.mxu0 0.0
      %97 = vmatprep.subr.mxu0 0.0
      %98 = vmatpush1.msra.mxu0 0.0
      %99 = vmatprep.subr.mxu0 0.0
      %100 = vmatpush1.msra.mxu0 0.0
      %101 = vmatprep.subr.mxu0 0.0
      %102 = vmatpush1.msra.mxu0 0.0
      %103 = vmatprep.subr.mxu0 0.0
      %104 = vmatpush1.msra.mxu0 0.0
      %105 = vmatprep.subr.mxu0 0.0
      %106 = vmatpush1.msra.mxu0 0.0
      %107 = vmatprep.subr.mxu0 0.0
      %108 = vmatpush1.msra.mxu0 0.0
      %109 = vmatprep.subr.mxu0 0.0
      %110 = vmatpush1.msra.mxu0 0.0
      %111 = vmatprep.subr.mxu0 0.0
      %112 = vmatpush1.msra.mxu0 0.0
      %113 = vmatprep.subr.mxu0 0.0
      %114 = vmatpush1.msra.mxu0 0.0
      %115 = vmatprep.subr.mxu0 0.0
      %116 = vmatpush1.msra.mxu0 0.0
      %117 = vmatprep.subr.mxu0 0.0
      %118 = vmatpush1.msra.mxu0 0.0
      %119 = vmatprep.subr.mxu0 0.0
      %120 = vmatpush1.msra.mxu0 0.0
      %121 = vmatprep.subr.mxu0 0.0
      %122 = vmatpush1.msra.mxu0 0.0
      %123 = vmatprep.subr.mxu0 0.0
      %124 = vmatpush1.msra.mxu0 %v91
      %125 = vmatprep.subr.mxu0 0.0
      %126 = vmatpush2.msra.mxu0 0.0
      %127 = vmatprep.subr.mxu0 0.0
      %128 = vmatpush2.msra.mxu0 0.0
      %129 = vmatprep.subr.mxu0 0.0
      %130 = vmatpush2.msra.mxu0 0.0
      %131 = vmatprep.subr.mxu0 0.0
      %132 = vmatpush2.msra.mxu0 0.0
      %133 = vmatprep.subr.mxu0 0.0
      %134 = vmatpush2.msra.mxu0 0.0
      %135 = vmatprep.subr.mxu0 0.0
      %136 = vmatpush2.msra.mxu0 0.0
      %137 = vmatprep.subr.mxu0 0.0
      %138 = vmatpush2.msra.mxu0 0.0
      %139 = vmatprep.subr.mxu0 0.0
      %140 = vmatpush2.msra.mxu0 0.0
      %141 = vmatprep.subr.mxu0 0.0
      %142 = vmatpush2.msra.mxu0 0.0
      %143 = vmatprep.subr.mxu0 0.0
      %144 = vmatpush2.msra.mxu0 0.0
      %145 = vmatprep.subr.mxu0 0.0
      %146 = vmatpush2.msra.mxu0 0.0
      %147 = vmatprep.subr.mxu0 0.0
      %148 = vmatpush2.msra.mxu0 0.0
      %149 = vmatprep.subr.mxu0 0.0
      %150 = vmatpush2.msra.mxu0 0.0
      %151 = vmatprep.subr.mxu0 0.0
      %152 = vmatpush2.msra.mxu0 0.0
      %153 = vmatprep.subr.mxu0 0.0
      %154 = vmatpush2.msra.mxu0 0.0
      %155 = vmatprep.subr.mxu0 0.0
      %156 = vmatpush2.msra.mxu0 0.0
      %157 = vmatprep.mubr.f32.mxu0 0.0
      %158 = vmatmul.mubr.f32.gmra.mxu0 %v88
      %v159 = vpop.f32.mrf.mxu0
      %v160 = vadd.f32 %v71, %v159
      %v161 = vpop.f32.mrf.mxu0
      %162 = vdwg.mxu0
      %v163 = vld [vmem:[%s3] sm:$0xf]
      %v164 = vld [vmem:[%s4] sm:$0x1]
      %v166 = vlaneseq
      %v167 = vshrl.u32 %v166, 7
      %v168 = vsub.s32 0, %v167
      %v169 = vrot.slane %v164, %v168
      %v172 = vsel %vm58, %v163, 0
      %174 = vmatprep.subr.mxu0 0.0
      %175 = vmatpush1.msra.mxu0 0.0
      %176 = vmatprep.subr.mxu0 0.0
      %177 = vmatpush1.msra.mxu0 0.0
      %178 = vmatprep.subr.mxu0 0.0
      %179 = vmatpush1.msra.mxu0 0.0
      %180 = vmatprep.subr.mxu0 0.0
      %181 = vmatpush1.msra.mxu0 0.0
      %182 = vmatprep.subr.mxu0 0.0
      %183 = vmatpush1.msra.mxu0 0.0
      %184 = vmatprep.subr.mxu0 0.0
      %185 = vmatpush1.msra.mxu0 0.0
      %186 = vmatprep.subr.mxu0 0.0
      %187 = vmatpush1.msra.mxu0 0.0
      %188 = vmatprep.subr.mxu0 0.0
      %189 = vmatpush1.msra.mxu0 0.0
      %190 = vmatprep.subr.mxu0 0.0
      %191 = vmatpush1.msra.mxu0 0.0
      %192 = vmatprep.subr.mxu0 0.0
      %193 = vmatpush1.msra.mxu0 0.0
      %194 = vmatprep.subr.mxu0 0.0
      %195 = vmatpush1.msra.mxu0 0.0
      %196 = vmatprep.subr.mxu0 0.0
      %197 = vmatpush1.msra.mxu0 0.0
      %198 = vmatprep.subr.mxu0 0.0
      %199 = vmatpush1.msra.mxu0 0.0
      %200 = vmatprep.subr.mxu0 0.0
      %201 = vmatpush1.msra.mxu0 0.0
      %202 = vmatprep.subr.mxu0 0.0
      %203 = vmatpush1.msra.mxu0 0.0
      %204 = vmatprep.subr.mxu0 0.0
      %205 = vmatpush1.msra.mxu0 %v172
      %206 = vmatprep.subr.mxu0 0.0
      %207 = vmatpush2.msra.mxu0 0.0
      %208 = vmatprep.subr.mxu0 0.0
      %209 = vmatpush2.msra.mxu0 0.0
      %210 = vmatprep.subr.mxu0 0.0
      %211 = vmatpush2.msra.mxu0 0.0
      %212 = vmatprep.subr.mxu0 0.0
      %213 = vmatpush2.msra.mxu0 0.0
      %214 = vmatprep.subr.mxu0 0.0
      %215 = vmatpush2.msra.mxu0 0.0
      %216 = vmatprep.subr.mxu0 0.0
      %217 = vmatpush2.msra.mxu0 0.0
      %218 = vmatprep.subr.mxu0 0.0
      %219 = vmatpush2.msra.mxu0 0.0
      %220 = vmatprep.subr.mxu0 0.0
      %221 = vmatpush2.msra.mxu0 0.0
      %222 = vmatprep.subr.mxu0 0.0
      %223 = vmatpush2.msra.mxu0 0.0
      %224 = vmatprep.subr.mxu0 0.0
      %225 = vmatpush2.msra.mxu0 0.0
      %226 = vmatprep.subr.mxu0 0.0
      %227 = vmatpush2.msra.mxu0 0.0
      %228 = vmatprep.subr.mxu0 0.0
      %229 = vmatpush2.msra.mxu0 0.0
      %230 = vmatprep.subr.mxu0 0.0
      %231 = vmatpush2.msra.mxu0 0.0
      %232 = vmatprep.subr.mxu0 0.0
      %233 = vmatpush2.msra.mxu0 0.0
      %234 = vmatprep.subr.mxu0 0.0
      %235 = vmatpush2.msra.mxu0 0.0
      %236 = vmatprep.subr.mxu0 0.0
      %237 = vmatpush2.msra.mxu0 0.0
      %238 = vmatprep.mubr.f32.mxu0 0.0
      %239 = vmatmul.mubr.f32.gmra.mxu0 %v88
      %v240 = vpop.f32.mrf.mxu0
      %v241 = vadd.f32 %v169, %v240
      %v242 = vpop.f32.mrf.mxu0
      %243 = vdwg.mxu0
      %v244 = vmax.f32 %v241, 0.0
      %v245 = vld [vmem:[%s5] sm:$0x3]
      %v246 = vld [vmem:[#allocation3] sm:$0x1]
      %v248 = vlaneseq
      %v249 = vshrl.u32 %v248, 7
      %v250 = vsub.s32 0, %v249
      %v251 = vrot.slane %v246, %v250
      %vm253 = vcmask 15360
      %v255 = vsel %vm253, %v244, 0
      %vm257 = vcmask 1041408
      %v259 = vsel %vm257, %v245, 0
      %261 = vmatprep.subr.mxu0 0.0
      %262 = vmatpush1.msra.mxu0 0.0
      %263 = vmatprep.subr.mxu0 0.0
      %264 = vmatpush1.msra.mxu0 0.0
      %265 = vmatprep.subr.mxu0 0.0
      %266 = vmatpush1.msra.mxu0 0.0
      %267 = vmatprep.subr.mxu0 0.0
      %268 = vmatpush1.msra.mxu0 0.0
      %269 = vmatprep.subr.mxu0 0.0
      %270 = vmatpush1.msra.mxu0 0.0
      %271 = vmatprep.subr.mxu0 0.0
      %272 = vmatpush1.msra.mxu0 0.0
      %273 = vmatprep.subr.mxu0 0.0
      %274 = vmatpush1.msra.mxu0 0.0
      %275 = vmatprep.subr.mxu0 0.0
      %276 = vmatpush1.msra.mxu0 0.0
      %277 = vmatprep.subr.mxu0 0.0
      %278 = vmatpush1.msra.mxu0 0.0
      %279 = vmatprep.subr.mxu0 0.0
      %280 = vmatpush1.msra.mxu0 0.0
      %281 = vmatprep.subr.mxu0 0.0
      %282 = vmatpush1.msra.mxu0 0.0
      %283 = vmatprep.subr.mxu0 0.0
      %284 = vmatpush1.msra.mxu0 0.0
      %285 = vmatprep.subr.mxu0 0.0
      %286 = vmatpush1.msra.mxu0 0.0
      %287 = vmatprep.subr.mxu0 0.0
      %288 = vmatpush1.msra.mxu0 0.0
      %289 = vmatprep.subr.mxu0 0.0
      %290 = vmatpush1.msra.mxu0 0.0
      %291 = vmatprep.subr.mxu0 0.0
      %292 = vmatpush1.msra.mxu0 %v259
      %293 = vmatprep.subr.mxu0 0.0
      %294 = vmatpush2.msra.mxu0 0.0
      %295 = vmatprep.subr.mxu0 0.0
      %296 = vmatpush2.msra.mxu0 0.0
      %297 = vmatprep.subr.mxu0 0.0
      %298 = vmatpush2.msra.mxu0 0.0
      %299 = vmatprep.subr.mxu0 0.0
      %300 = vmatpush2.msra.mxu0 0.0
      %301 = vmatprep.subr.mxu0 0.0
      %302 = vmatpush2.msra.mxu0 0.0
      %303 = vmatprep.subr.mxu0 0.0
      %304 = vmatpush2.msra.mxu0 0.0
      %305 = vmatprep.subr.mxu0 0.0
      %306 = vmatpush2.msra.mxu0 0.0
      %307 = vmatprep.subr.mxu0 0.0
      %308 = vmatpush2.msra.mxu0 0.0
      %309 = vmatprep.subr.mxu0 0.0
      %310 = vmatpush2.msra.mxu0 0.0
      %311 = vmatprep.subr.mxu0 0.0
      %312 = vmatpush2.msra.mxu0 0.0
      %313 = vmatprep.subr.mxu0 0.0
      %314 = vmatpush2.msra.mxu0 0.0
      %315 = vmatprep.subr.mxu0 0.0
      %316 = vmatpush2.msra.mxu0 0.0
      %317 = vmatprep.subr.mxu0 0.0
      %318 = vmatpush2.msra.mxu0 0.0
      %319 = vmatprep.subr.mxu0 0.0
      %320 = vmatpush2.msra.mxu0 0.0
      %321 = vmatprep.subr.mxu0 0.0
      %322 = vmatpush2.msra.mxu0 0.0
      %323 = vmatprep.subr.mxu0 0.0
      %324 = vmatpush2.msra.mxu0 0.0
      %325 = vmatprep.mubr.f32.mxu0 0.0
      %326 = vmatmul.mubr.f32.gmra.mxu0 %v255
      %v327 = vpop.f32.mrf.mxu0
      %v328 = vadd.f32 %v251, %v327
      %v329 = vpop.f32.mrf.mxu0
      %330 = vdwg.mxu0
      %v331 = vsub.f32 0.0, %v328
      %v332 = vmul.f32 %v331, 1.442695
      %v333 = vpow.pop %v332
      %v334 = vadd.f32 %v333, 1.0
      %v335 = vrcp.pop %v334
      %v336 = vmul.f32 1.0, %v335
      %vm337 = vcmask 74752
      %338 = vst.msk [vmem:[#allocation4] sm:$0x3] %vm337, %v160
      %vm339 = vcmask 1024
      %340 = vst.msk [vmem:[%s8] sm:$0x3] %vm339, %v336
    $region37: #{learned_uncertainty_gate.1} parent=1 // pred_fallthru
      _
    // Predicated region
    $region38: #{learned_uncertainty_gate.1} parent=1 // pred_check
      _
    $region39: #{learned_uncertainty_gate.1} parent=1 // pred_check_branch
      %342 = sbr.rel (0) target = $region41
    $region40: #{learned_uncertainty_gate.1} parent=1 // pred_region
      %s344 = ssub.s32 32, 32
      %345 = vsyncadd [#allocation5], %s344
      %s347 = sshll.u32 [#allocation4], 4
      %s348 = int_to_ptr.vmem [resolvable:$true] %s347
      %350 = dma.vmem_to_hbm [thread:$0]  %s348, 32, %s7, [#allocation5]
    $region41: #{learned_uncertainty_gate.1} parent=1 // pred_fallthru
      _
    // Predicated region
    $region42: #{learned_uncertainty_gate.1} parent=1 // pred_check
      _
    $region43: #{learned_uncertainty_gate.1} parent=1 // pred_check_branch
      %352 = sbr.rel (0) target = $region45
    $region44: #{learned_uncertainty_gate.1} parent=1 // pred_region
      _
    $region45: #{learned_uncertainty_gate.1} parent=1 // pred_fallthru
      _
    // Predicated region
    $region46: #{learned_uncertainty_gate.1} parent=1 // pred_check
      _
    $region47: #{learned_uncertainty_gate.1} parent=1 // pred_check_branch
      %354 = sbr.rel (0) target = $region49
    $region48: #{learned_uncertainty_gate.1} parent=1 // pred_region
      %355 = dma.done [#allocation5], 32
    $region49: #{learned_uncertainty_gate.1} parent=1 // pred_fallthru
      _
    // Predicated region
    $region50: #{learned_uncertainty_gate.1} parent=1 // pred_check
      _
    $region51: #{learned_uncertainty_gate.1} parent=1 // pred_check_branch
      %357 = sbr.rel (0) target = $region53
    $region52: #{learned_uncertainty_gate.1} parent=1 // pred_region
      _
    $region53: #{learned_uncertainty_gate.1} parent=1 // pred_fallthru
      _
    %358 = vsyncpa [#allocation5], 1

</llo_original>
